<compile_context>
chip_gen: v7x
topology: tpu7x:2x2x1
jax: 0.10.0
libtpu: 0.0.40
codegen_flags: <defaults>
</compile_context>

<pallas_src>
import functools

import jax
import jax.numpy as jnp
from jax.experimental import pallas as pl
from jax.experimental.pallas import tpu as pltpu


def _round_up(x, m):
    return ((x + m - 1) // m) * m


def _gcn_kernel(a_ref, xsk_ref, xsi_ref, dinv_ref, w1_ref, b1_ref, w2_ref,
                b2_ref, out_ref, acc_ref, *, cout):
    """Grid = (row tiles, K tiles). Accumulate (A @ (dinv*X)) over K tiles."""
    k = pl.program_id(1)
    nk = pl.num_programs(1)

    @pl.when(k == 0)
    def _():
        acc_ref[...] = jnp.zeros_like(acc_ref)

    # Dominant matmul: bf16 MXU inputs, f32 accumulation.  acc: [TM, CIN_P]
    acc_ref[...] += jnp.dot(a_ref[...], xsk_ref[...],
                            preferred_element_type=jnp.float32)

    @pl.when(k == nk - 1)
    def _():
        dinv = dinv_ref[...]                          # [TM, 1] f32
        xs_i = xsi_ref[...].astype(jnp.float32)       # self-loop term (dinv*X)_i
        # D^-1/2 (A + I) D^-1/2 X  ==  dinv * (A @ (dinv*X) + (dinv*X))
        h_pre = dinv * (acc_ref[...] + xs_i)          # [TM, CIN_P] f32

        # GCNConv tail: @ W1 + b1, ReLU
        h = jnp.dot(h_pre, w1_ref[...], preferred_element_type=jnp.float32)
        h = jnp.maximum(h + b1_ref[...], 0.0)         # [TM, H_P]

        # Linear output layer + ReLU
        y = jnp.dot(h, w2_ref[...], preferred_element_type=jnp.float32)
        y = jnp.maximum(y + b2_ref[...], 0.0)         # [TM, COUT_P]

        # Mask padded output lanes, then numerically-stable log_softmax.
        lane = jax.lax.broadcasted_iota(jnp.int32, y.shape, 1)
        y = jnp.where(lane < cout, y, -1e30)
        m = jnp.max(y, axis=-1, keepdims=True)
        z = y - m
        lse = jnp.log(jnp.sum(jnp.exp(z), axis=-1, keepdims=True))
        out_ref[...] = z - lse


def gcn_forward(x, edge_index, batch, params):
    """x: [N, Cin] f32, edge_index: [2, E] i32, batch: [N] i32 (unused)."""
    del batch  # pooling=False in this config
    N, cin = x.shape
    w1, b1, w2, b2 = params  # w1:[Cin,H] b1:[1,H] w2:[H,Cout] b2:[1,Cout]
    hid = w1.shape[1]
    cout = w2.shape[1]

    # ---- tiling: row/K tiles of the dense adjacency -------------------------
    if N >= 512:
        TM = TK = 512
    else:
        TM = TK = _round_up(max(N, 8), 128)
    n_pad = _round_up(N, TM)

    CIN_P = _round_up(cin, 128)
    H_P = _round_up(hid, 128)
    COUT_P = _round_up(cout, 128)

    # ---- glue: raw adjacency + degree vector (normalization folded into the
    #            kernel -- no dense A_hat is materialized) --------------------
    src = edge_index[0]
    dst = edge_index[1]
    adj = jnp.zeros((n_pad, n_pad), jnp.float32).at[dst, src].add(1.0)
    deg = jnp.sum(adj, axis=1) + 1.0               # degree of A + I (>= 1)
    dinv = jax.lax.rsqrt(deg)                      # D^-1/2
    a_bf16 = adj.astype(jnp.bfloat16)              # bf16 halves dominant DMA

    x_pad = jnp.zeros((n_pad, CIN_P), jnp.float32).at[:N, :cin].set(x)
    xs = (dinv[:, None] * x_pad).astype(jnp.bfloat16)   # right-scaled features
    dinv2d = dinv[:, None].astype(jnp.float32)          # [n_pad, 1]

    w1p = jnp.zeros((CIN_P, H_P), jnp.float32).at[:cin, :hid].set(w1)
    b1p = jnp.zeros((1, H_P), jnp.float32).at[:, :hid].set(b1)
    w2p = jnp.zeros((H_P, COUT_P), jnp.float32).at[:hid, :cout].set(w2)
    b2p = jnp.zeros((1, COUT_P), jnp.float32).at[:, :cout].set(b2)

    grid = (n_pad // TM, n_pad // TK)
    kernel = functools.partial(_gcn_kernel, cout=cout)

    out_pad = pl.pallas_call(
        kernel,
        out_shape=jax.ShapeDtypeStruct((n_pad, COUT_P), jnp.float32),
        grid_spec=pltpu.PrefetchScalarGridSpec(
            num_scalar_prefetch=0,
            grid=grid,
            in_specs=[
                pl.BlockSpec((TM, TK), lambda i, k: (i, k)),        # A tile
                pl.BlockSpec((TK, CIN_P), lambda i, k: (k, 0)),     # (dinv*X)_k
                pl.BlockSpec((TM, CIN_P), lambda i, k: (i, 0)),     # (dinv*X)_i
                pl.BlockSpec((TM, 1), lambda i, k: (i, 0)),         # dinv_i
                pl.BlockSpec((CIN_P, H_P), lambda i, k: (0, 0)),    # W1
                pl.BlockSpec((1, H_P), lambda i, k: (0, 0)),        # b1
                pl.BlockSpec((H_P, COUT_P), lambda i, k: (0, 0)),   # W2
                pl.BlockSpec((1, COUT_P), lambda i, k: (0, 0)),     # b2
            ],
            out_specs=pl.BlockSpec((TM, COUT_P), lambda i, k: (i, 0)),
            scratch_shapes=[pltpu.VMEM((TM, CIN_P), jnp.float32)],
        ),
        compiler_params=pltpu.CompilerParams(
            dimension_semantics=("parallel", "arbitrary"),
            vmem_limit_bytes=32 * 1024 * 1024,
        ),
    )(a_bf16, xs, xs, dinv2d, w1p, b1p, w2p, b2p)

    return out_pad[:N, :cout]


def gcn_reference(x, edge_index, params):
    """Pure-JAX reference matching the original module semantics."""
    w1, b1, w2, b2 = params
    N = x.shape[0]
    adj = jnp.zeros((N, N), jnp.float32).at[edge_index[1], edge_index[0]].add(1.0)
    adj = adj + jnp.eye(N, dtype=jnp.float32)
    deg = jnp.sum(adj, axis=1)
    dinv = jnp.where(deg > 0, jax.lax.rsqrt(deg), 0.0)
    a_hat = dinv[:, None] * adj * dinv[None, :]
    h = jnp.maximum(a_hat @ x @ w1 + b1, 0.0)
    y = jnp.maximum(h @ w2 + b2, 0.0)
    return jax.nn.log_softmax(y, axis=-1)


def init_params(key, in_channels, hid, out_channels):
    k1, k2, k3, k4 = jax.random.split(key, 4)
    # GCNConv weight [Cin, H] (glorot-style scale), bias zeros
    w1 = jax.random.normal(k1, (in_channels, hid), jnp.float32) * (
        1.0 / jnp.sqrt(jnp.float32(in_channels))
    )
    b1 = jnp.zeros((1, hid), jnp.float32)
    # Linear output layer: torch weight is [Cout, H]; we store transposed [H, Cout]
    w2 = jax.random.normal(k2, (hid, out_channels), jnp.float32) * (
        1.0 / jnp.sqrt(jnp.float32(hid))
    )
    b2 = jax.random.uniform(
        k3, (1, out_channels), jnp.float32, -1.0 / jnp.sqrt(hid), 1.0 / jnp.sqrt(hid)
    )
    del k4
    return (w1, b1, w2, b2)


if __name__ == "__main__":
    key = jax.random.PRNGKey(0)
    kx, ke, kp = jax.random.split(key, 3)

    N = 16            # nodes
    E = 32            # edges
    IN_CH = 8         # in_channels
    HID = 16          # hid_features[0]
    OUT_CH = 4        # out_channels

    x = jax.random.normal(kx, (N, IN_CH), jnp.float32)
    edge_index = jax.random.randint(ke, (2, E), 0, N, jnp.int32)
    batch = jnp.zeros((N,), jnp.int32)   # single graph; unused (pooling=False)

    params = init_params(kp, IN_CH, HID, OUT_CH)

    out = gcn_forward(x, edge_index, batch, params)
    out = jax.block_until_ready(out)

    assert out.shape == (N, OUT_CH)
    # rows of log_softmax should exp-sum to 1
    assert bool(jnp.allclose(jnp.sum(jnp.exp(out), axis=-1), 1.0, atol=1e-4))
    # match the pure-JAX reference (bf16 adjacency path -> loose tolerance)
    ref = gcn_reference(x, edge_index, params)
    assert bool(jnp.allclose(out, ref, atol=1e-1)), float(jnp.max(jnp.abs(out - ref)))
    print("KERNEL_OK")
</pallas_src>

<mosaic_0001>
module attributes {stable_mosaic.version = 11 : i64} {
  func.func @_gcn_kernel(%arg0: i32, %arg1: i32, %arg2: memref<128x128xbf16, #tpu.memory_space<vmem>>, %arg3: memref<128x128xbf16, #tpu.memory_space<vmem>>, %arg4: memref<128x128xbf16, #tpu.memory_space<vmem>>, %arg5: memref<128x1xf32, #tpu.memory_space<vmem>>, %arg6: memref<128x128xf32, #tpu.memory_space<vmem>>, %arg7: memref<1x128xf32, #tpu.memory_space<vmem>>, %arg8: memref<128x128xf32, #tpu.memory_space<vmem>>, %arg9: memref<1x128xf32, #tpu.memory_space<vmem>>, %arg10: memref<128x128xf32, #tpu.memory_space<vmem>>, %arg11: memref<128x128xf32, #tpu.memory_space<vmem>>) attributes {dimension_semantics = [#tpu.dimension_semantics<parallel>, #tpu.dimension_semantics<arbitrary>], iteration_bounds = array<i64: 1, 1>, scalar_prefetch = 0 : i64, scratch_operands = 1 : i64, tpu.core_type = #tpu.core_type<tc>, window_params = [{transform_indices = @transform_0, window_bounds = array<i64: 128, 128>}, {transform_indices = @transform_1, window_bounds = array<i64: 128, 128>}, {transform_indices = @transform_2, window_bounds = array<i64: 128, 128>}, {transform_indices = @transform_3, window_bounds = array<i64: 128, 1>}, {pipeline_mode = #tpu.pipeline_mode<synchronous>, transform_indices = @transform_4, window_bounds = array<i64: 128, 128>}, {pipeline_mode = #tpu.pipeline_mode<synchronous>, transform_indices = @transform_5, window_bounds = array<i64: 1, 128>}, {pipeline_mode = #tpu.pipeline_mode<synchronous>, transform_indices = @transform_6, window_bounds = array<i64: 128, 128>}, {pipeline_mode = #tpu.pipeline_mode<synchronous>, transform_indices = @transform_7, window_bounds = array<i64: 1, 128>}, {transform_indices = @transform_8, window_bounds = array<i64: 128, 128>}]} {
    %c0_i32 = arith.constant 0 : i32
    %0 = arith.cmpi eq, %arg1, %c0_i32 : i32
    %1 = arith.extui %0 : i1 to i32
    %c0_i32_0 = arith.constant 0 : i32
    %2 = arith.cmpi ne, %1, %c0_i32_0 : i32
    scf.if %2 {
      %cst_10 = arith.constant 0.000000e+00 : f32
      %12 = vector.broadcast %cst_10 : f32 to vector<128x128xf32>
      %c0_11 = arith.constant 0 : index
      %c0_12 = arith.constant 0 : index
      %13 = vector.load %arg11[%c0_11, %c0_12] : memref<128x128xf32, #tpu.memory_space<vmem>>, vector<128x128xf32>
      tpu.vector_store %arg11[%c0_11, %c0_12], %12 {strides = array<i32>} : memref<128x128xf32, #tpu.memory_space<vmem>>, vector<128x128xf32>,
    } else {
    }
    %c0 = arith.constant 0 : index
    %c0_1 = arith.constant 0 : index
    %3 = vector.load %arg11[%c0, %c0_1] : memref<128x128xf32, #tpu.memory_space<vmem>>, vector<128x128xf32>
    %c0_2 = arith.constant 0 : index
    %c0_3 = arith.constant 0 : index
    %4 = vector.load %arg2[%c0_2, %c0_3] : memref<128x128xbf16, #tpu.memory_space<vmem>>, vector<128x128xbf16>
    %c0_4 = arith.constant 0 : index
    %c0_5 = arith.constant 0 : index
    %5 = vector.load %arg3[%c0_4, %c0_5] : memref<128x128xbf16, #tpu.memory_space<vmem>>, vector<128x128xbf16>
    %cst = arith.constant dense<0.000000e+00> : vector<128x128xf32>
    %6 = tpu.matmul %4, %5, %cst {dimension_numbers = #tpu.dot_dimension_numbers<[1], [0], [0], [1], [0, 0, 1, 1], [], []>} : vector<128x128xbf16>, vector<128x128xbf16>, vector<128x128xf32> -> vector<128x128xf32>
    %7 = arith.addf %3, %6 : vector<128x128xf32>
    %c0_6 = arith.constant 0 : index
    %c0_7 = arith.constant 0 : index
    %8 = vector.load %arg11[%c0_6, %c0_7] : memref<128x128xf32, #tpu.memory_space<vmem>>, vector<128x128xf32>
    tpu.vector_store %arg11[%c0_6, %c0_7], %7 {strides = array<i32>} : memref<128x128xf32, #tpu.memory_space<vmem>>, vector<128x128xf32>,
    %c0_i32_8 = arith.constant 0 : i32
    %9 = arith.cmpi eq, %arg1, %c0_i32_8 : i32
    %10 = arith.extui %9 : i1 to i32
    %c0_i32_9 = arith.constant 0 : i32
    %11 = arith.cmpi ne, %10, %c0_i32_9 : i32
    scf.if %11 {
      %c0_10 = arith.constant 0 : index
      %c0_11 = arith.constant 0 : index
      %12 = vector.load %arg5[%c0_10, %c0_11] : memref<128x1xf32, #tpu.memory_space<vmem>>, vector<128x1xf32>
      %c0_12 = arith.constant 0 : index
      %c0_13 = arith.constant 0 : index
      %13 = vector.load %arg4[%c0_12, %c0_13] : memref<128x128xbf16, #tpu.memory_space<vmem>>, vector<128x128xbf16>
      %14 = arith.extf %13 : vector<128x128xbf16> to vector<128x128xf32>
      %c0_14 = arith.constant 0 : index
      %c0_15 = arith.constant 0 : index
      %15 = vector.load %arg11[%c0_14, %c0_15] : memref<128x128xf32, #tpu.memory_space<vmem>>, vector<128x128xf32>
      %16 = arith.addf %15, %14 : vector<128x128xf32>
      %17 = vector.broadcast %12 : vector<128x1xf32> to vector<128x128xf32>
      %18 = arith.mulf %17, %16 : vector<128x128xf32>
      %c0_16 = arith.constant 0 : index
      %c0_17 = arith.constant 0 : index
      %19 = vector.load %arg6[%c0_16, %c0_17] : memref<128x128xf32, #tpu.memory_space<vmem>>, vector<128x128xf32>
      %cst_18 = arith.constant dense<0.000000e+00> : vector<128x128xf32>
      %20 = tpu.matmul %18, %19, %cst_18 {dimension_numbers = #tpu.dot_dimension_numbers<[1], [0], [0], [1], [0, 0, 1, 1], [], []>} : vector<128x128xf32>, vector<128x128xf32>, vector<128x128xf32> -> vector<128x128xf32>
      %c0_19 = arith.constant 0 : index
      %c0_20 = arith.constant 0 : index
      %21 = vector.load %arg7[%c0_19, %c0_20] : memref<1x128xf32, #tpu.memory_space<vmem>>, vector<1x128xf32>
      %22 = vector.broadcast %21 : vector<1x128xf32> to vector<128x128xf32>
      %23 = arith.addf %20, %22 : vector<128x128xf32>
      %cst_21 = arith.constant 0.000000e+00 : f32
      %24 = vector.broadcast %cst_21 : f32 to vector<128x128xf32>
      %25 = arith.maximumf %23, %24 : vector<128x128xf32>
      %c0_22 = arith.constant 0 : index
      %c0_23 = arith.constant 0 : index
      %26 = vector.load %arg8[%c0_22, %c0_23] : memref<128x128xf32, #tpu.memory_space<vmem>>, vector<128x128xf32>
      %cst_24 = arith.constant dense<0.000000e+00> : vector<128x128xf32>
      %27 = tpu.matmul %25, %26, %cst_24 {dimension_numbers = #tpu.dot_dimension_numbers<[1], [0], [0], [1], [0, 0, 1, 1], [], []>} : vector<128x128xf32>, vector<128x128xf32>, vector<128x128xf32> -> vector<128x128xf32>
      %c0_25 = arith.constant 0 : index
      %c0_26 = arith.constant 0 : index
      %28 = vector.load %arg9[%c0_25, %c0_26] : memref<1x128xf32, #tpu.memory_space<vmem>>, vector<1x128xf32>
      %29 = vector.broadcast %28 : vector<1x128xf32> to vector<128x128xf32>
      %30 = arith.addf %27, %29 : vector<128x128xf32>
      %cst_27 = arith.constant 0.000000e+00 : f32
      %31 = vector.broadcast %cst_27 : f32 to vector<128x128xf32>
      %32 = arith.maximumf %30, %31 : vector<128x128xf32>
      %33 = tpu.iota {dimensions = array<i32: 1>} : vector<128x128xi32>
      %c4_i32 = arith.constant 4 : i32
      %34 = vector.broadcast %c4_i32 : i32 to vector<128x128xi32>
      %35 = arith.cmpi slt, %33, %34 : vector<128x128xi32>
      %cst_28 = arith.constant -1.000000e+30 : f32
      %36 = vector.broadcast %cst_28 : f32 to vector<128x128xf32>
      %37 = arith.select %35, %32, %36 : vector<128x128xi1>, vector<128x128xf32>
      %cst_29 = arith.constant dense<0xFF800000> : vector<128xf32>
      %38 = vector.multi_reduction <maximumf>, %37, %cst_29 [1] : vector<128x128xf32> to vector<128xf32>
      %39 = vector.shape_cast %38 : vector<128xf32> to vector<128x1xf32>
      %40 = vector.broadcast %39 : vector<128x1xf32> to vector<128x128xf32>
      %41 = arith.subf %37, %40 : vector<128x128xf32>
      %42 = math.exp %41 : vector<128x128xf32>
      %cst_30 = arith.constant dense<0.000000e+00> : vector<128xf32>
      %43 = vector.multi_reduction <add>, %42, %cst_30 [1] : vector<128x128xf32> to vector<128xf32>
      %44 = vector.shape_cast %43 : vector<128xf32> to vector<128x1xf32>
      %45 = math.log %44 : vector<128x1xf32>
      %46 = vector.broadcast %45 : vector<128x1xf32> to vector<128x128xf32>
      %47 = arith.subf %41, %46 : vector<128x128xf32>
      %c0_31 = arith.constant 0 : index
      %c0_32 = arith.constant 0 : index
      %48 = vector.load %arg10[%c0_31, %c0_32] : memref<128x128xf32, #tpu.memory_space<vmem>>, vector<128x128xf32>
      tpu.vector_store %arg10[%c0_31, %c0_32], %47 {strides = array<i32>} : memref<128x128xf32, #tpu.memory_space<vmem>>, vector<128x128xf32>,
    } else {
    }
    return
  }
  func.func @transform_0(%arg0: i32, %arg1: i32) -> (i32, i32) {
    %c0_i32 = arith.constant 0 : i32
    return %arg0, %arg1 : i32, i32
  }
  func.func @transform_1(%arg0: i32, %arg1: i32) -> (i32, i32) {
    %c0_i32 = arith.constant 0 : i32
    %c0_i32_0 = arith.constant 0 : i32
    return %arg1, %c0_i32 : i32, i32
  }
  func.func @transform_2(%arg0: i32, %arg1: i32) -> (i32, i32) {
    %c0_i32 = arith.constant 0 : i32
    %c0_i32_0 = arith.constant 0 : i32
    return %arg0, %c0_i32 : i32, i32
  }
  func.func @transform_3(%arg0: i32, %arg1: i32) -> (i32, i32) {
    %c0_i32 = arith.constant 0 : i32
    %c0_i32_0 = arith.constant 0 : i32
    return %arg0, %c0_i32 : i32, i32
  }
  func.func @transform_4(%arg0: i32, %arg1: i32) -> (i32, i32) {
    %c0_i32 = arith.constant 0 : i32
    %c0_i32_0 = arith.constant 0 : i32
    %c0_i32_1 = arith.constant 0 : i32
    return %c0_i32, %c0_i32_0 : i32, i32
  }
  func.func @transform_5(%arg0: i32, %arg1: i32) -> (i32, i32) {
    %c0_i32 = arith.constant 0 : i32
    %c0_i32_0 = arith.constant 0 : i32
    %c0_i32_1 = arith.constant 0 : i32
    return %c0_i32, %c0_i32_0 : i32, i32
  }
  func.func @transform_6(%arg0: i32, %arg1: i32) -> (i32, i32) {
    %c0_i32 = arith.constant 0 : i32
    %c0_i32_0 = arith.constant 0 : i32
    %c0_i32_1 = arith.constant 0 : i32
    return %c0_i32, %c0_i32_0 : i32, i32
  }
  func.func @transform_7(%arg0: i32, %arg1: i32) -> (i32, i32) {
    %c0_i32 = arith.constant 0 : i32
    %c0_i32_0 = arith.constant 0 : i32
    %c0_i32_1 = arith.constant 0 : i32
    return %c0_i32, %c0_i32_0 : i32, i32
  }
  func.func @transform_8(%arg0: i32, %arg1: i32) -> (i32, i32) {
    %c0_i32 = arith.constant 0 : i32
    %c0_i32_0 = arith.constant 0 : i32
    return %arg0, %c0_i32 : i32, i32
  }
}

</mosaic_0001>

<llo_original>
// kernel: tpu_custom_call.1
$region0: #{tpu_custom_call.1}
  #allocation0 [shape = 'u32[]', space=smem, size = 0x4, offset = 0x4, fixed_abs, tag = 'smem constant byte address 0x4 - core index']
  #allocation1 [shape = 'u32[144,128]{1,0:T(1,128)}', space=vmem, size = 0x12000, scoped, tag = 'internal scratch']
  #allocation2 [shape = 'f32[128,128]{1,0:T(8,128)}', space=vmem, size = 0x10000, scoped, tag = 'scratch operand']
  %s0 = inlined_call_operand.hbm [shape: bf16[128,128], index: 0, kind: input, shape index: {}]
  %s1 = inlined_call_operand.hbm [shape: bf16[128,128], index: 1, kind: input, shape index: {}]
  %s2 = inlined_call_operand.hbm [shape: bf16[128,128], index: 2, kind: input, shape index: {}]
  %s3 = inlined_call_operand.vmem [shape: f32[128,1], index: 3, kind: input, shape index: {}]
  %s4 = inlined_call_operand.vmem [shape: f32[128,128], index: 4, kind: input, shape index: {}]
  %s5 = inlined_call_operand.vmem [shape: f32[1,128], index: 5, kind: input, shape index: {}]
  %s6 = inlined_call_operand.hbm [shape: f32[128,128], index: 6, kind: input, shape index: {}]
  %s7 = inlined_call_operand.vmem [shape: f32[1,128], index: 7, kind: input, shape index: {}]
  %s8 = inlined_call_operand.hbm [shape: f32[128,128], index: 8, kind: output, shape index: {}]
  %s9 = sld [smem:[#allocation0]]
  $region66: #{tpu_custom_call.1} parent=0
    _
  %s11 = ssub.s32 1, %s9
  %s12 = scalar_select 0, %s11, %s9
  $region1: #{tpu_custom_call.1} parent=0
    #allocation3 [shape = 'u8[32768]{0}', space=vmem, size = 0x8000, scoped, tag = 'input window, operand 0, single buffered']
    #allocation4 [shape = 's32[1]{0}', space=sflag, size = 0x4, scoped, tag = 'scoped memory for tpu_custom_call.1']
    #allocation5 [shape = 's32[1]{0}', space=sflag, size = 0x4, scoped, tag = 'scoped memory for tpu_custom_call.1']
    #allocation6 [shape = 'u8[32768]{0}', space=vmem, size = 0x8000, scoped, tag = 'input window, operand 1, single buffered']
    #allocation7 [shape = 's32[1]{0}', space=sflag, size = 0x4, scoped, tag = 'scoped memory for tpu_custom_call.1']
    #allocation8 [shape = 'u8[32768]{0}', space=vmem, size = 0x8000, scoped, tag = 'input window, operand 2, single buffered']
    #allocation9 [shape = 'u8[65536]{0}', space=vmem, size = 0x10000, scoped, tag = 'input window, operand 6, single buffered']
    #allocation10 [shape = 's32[1]{0}', space=sflag, size = 0x4, scoped, tag = 'scoped memory for tpu_custom_call.1']
    #allocation11 [shape = 'u8[65536]{0}', space=vmem, size = 0x10000, scoped, tag = 'output window, operand 0, single buffered']
    %13 = vsyncpa [#allocation4], 0
    %14 = vsyncpa [#allocation7], 0
    %15 = vsyncpa [#allocation10], 0
    %16 = vsyncpa [#allocation5], 0
    // Predicated region
    $region2: #{tpu_custom_call.1} parent=1 // pred_check
      _
    $region3: #{tpu_custom_call.1} parent=1 // pred_check_branch
      %18 = sbr.rel (0) target = $region5
    $region4: #{tpu_custom_call.1} parent=1 // pred_region
      %s20 = ssub.s32 1024, 1024
      %21 = vsyncadd [#allocation4], %s20
      %s22 = sshll.u32 [#allocation3], 4
      %s23 = int_to_ptr.vmem [resolvable:$true] %s22
      %28 = dma.hbm_to_vmem [thread:$0]  %s0, 1024, %s23, [#allocation4], 64, 64, 4
    $region5: #{tpu_custom_call.1} parent=1 // pred_fallthru
      _
    // Predicated region
    $region6: #{tpu_custom_call.1} parent=1 // pred_check
      _
    $region7: #{tpu_custom_call.1} parent=1 // pred_check_branch
      %30 = sbr.rel (0) target = $region9
    $region8: #{tpu_custom_call.1} parent=1 // pred_region
      %s32 = ssub.s32 1024, 1024
      %33 = vsyncadd [#allocation7], %s32
      %s34 = sshll.u32 [#allocation6], 4
      %s35 = int_to_ptr.vmem [resolvable:$true] %s34
      %40 = dma.hbm_to_vmem [thread:$0]  %s1, 1024, %s35, [#allocation7], 64, 64, 4
    $region9: #{tpu_custom_call.1} parent=1 // pred_fallthru
      _
    // Predicated region
    $region10: #{tpu_custom_call.1} parent=1 // pred_check
      _
    $region11: #{tpu_custom_call.1} parent=1 // pred_check_branch
      %42 = sbr.rel (0) target = $region13
    $region12: #{tpu_custom_call.1} parent=1 // pred_region
      %s44 = ssub.s32 1024, 1024
      %45 = vsyncadd [#allocation7], %s44
      %s46 = sshll.u32 [#allocation8], 4
      %s47 = int_to_ptr.vmem [resolvable:$true] %s46
      %52 = dma.hbm_to_vmem [thread:$0]  %s2, 1024, %s47, [#allocation7], 64, 64, 4
    $region13: #{tpu_custom_call.1} parent=1 // pred_fallthru
      _
    // Predicated region
    $region14: #{tpu_custom_call.1} parent=1 // pred_check
      _
    $region15: #{tpu_custom_call.1} parent=1 // pred_check_branch
      %54 = sbr.rel (0) target = $region17
    $region16: #{tpu_custom_call.1} parent=1 // pred_region
      _
    $region17: #{tpu_custom_call.1} parent=1 // pred_fallthru
      _
    // Predicated region
    $region18: #{tpu_custom_call.1} parent=1 // pred_check
      _
    $region19: #{tpu_custom_call.1} parent=1 // pred_check_branch
      %56 = sbr.rel (0) target = $region21
    $region20: #{tpu_custom_call.1} parent=1 // pred_region
      _
    $region21: #{tpu_custom_call.1} parent=1 // pred_fallthru
      _
    // Predicated region
    $region22: #{tpu_custom_call.1} parent=1 // pred_check
      _
    $region23: #{tpu_custom_call.1} parent=1 // pred_check_branch
      %58 = sbr.rel (0) target = $region25
    $region24: #{tpu_custom_call.1} parent=1 // pred_region
      _
    $region25: #{tpu_custom_call.1} parent=1 // pred_fallthru
      _
    // Predicated region
    $region26: #{tpu_custom_call.1} parent=1 // pred_check
      _
    $region27: #{tpu_custom_call.1} parent=1 // pred_check_branch
      %60 = sbr.rel (0) target = $region29
    $region28: #{tpu_custom_call.1} parent=1 // pred_region
      %s62 = ssub.s32 2048, 2048
      %63 = vsyncadd [#allocation10], %s62
      %s64 = sshll.u32 [#allocation9], 4
      %s65 = int_to_ptr.vmem [resolvable:$true] %s64
      %70 = dma.hbm_to_vmem [thread:$0]  %s6, 2048, %s65, [#allocation10], 128, 128, 8
    $region29: #{tpu_custom_call.1} parent=1 // pred_fallthru
      _
    // Predicated region
    $region30: #{tpu_custom_call.1} parent=1 // pred_check
      _
    $region31: #{tpu_custom_call.1} parent=1 // pred_check_branch
      %72 = sbr.rel (0) target = $region33
    $region32: #{tpu_custom_call.1} parent=1 // pred_region
      _
    $region33: #{tpu_custom_call.1} parent=1 // pred_fallthru
      _
    // Predicated region
    $region34: #{tpu_custom_call.1} parent=1 // pred_check
      _
    $region35: #{tpu_custom_call.1} parent=1 // pred_check_branch
      %74 = sbr.rel (0) target = $region37
    $region36: #{tpu_custom_call.1} parent=1 // pred_region
      %75 = dma.done [#allocation4], 1024
    $region37: #{tpu_custom_call.1} parent=1 // pred_fallthru
      _
    // Predicated region
    $region38: #{tpu_custom_call.1} parent=1 // pred_check
      _
    $region39: #{tpu_custom_call.1} parent=1 // pred_check_branch
      %77 = sbr.rel (0) target = $region41
    $region40: #{tpu_custom_call.1} parent=1 // pred_region
      %78 = dma.done [#allocation7], 1024
    $region41: #{tpu_custom_call.1} parent=1 // pred_fallthru
      _
    // Predicated region
    $region42: #{tpu_custom_call.1} parent=1 // pred_check
      _
    $region43: #{tpu_custom_call.1} parent=1 // pred_check_branch
      %80 = sbr.rel (0) target = $region45
    $region44: #{tpu_custom_call.1} parent=1 // pred_region
      %81 = dma.done [#allocation7], 1024
    $region45: #{tpu_custom_call.1} parent=1 // pred_fallthru
      _
    // Predicated region
    $region46: #{tpu_custom_call.1} parent=1 // pred_check
      _
    $region47: #{tpu_custom_call.1} parent=1 // pred_check_branch
      %83 = sbr.rel (0) target = $region49
    $region48: #{tpu_custom_call.1} parent=1 // pred_region
      %84 = dma.done [#allocation10], 2048
    $region49: #{tpu_custom_call.1} parent=1 // pred_fallthru
      _
    %p86 = scmp.eq.s32.totalorder 0, 0
    // Predicated region
    $region50: #{tpu_custom_call.1} parent=1 // pred_check
      %p87 = pneg %p86
    $region51: #{tpu_custom_call.1} parent=1 // pred_check_branch
      %89 = sbr.rel (%p87) target = $region53
    $region52: #{tpu_custom_call.1} parent=1 // pred_region
      %90 = vst [vmem:[#allocation2] sm:$0xff] 0.0
      %91 = vst [vmem:[#allocation2 + $0x8] sm:$0xff] 0.0
      %92 = vst [vmem:[#allocation2 + $0x10] sm:$0xff] 0.0
      %93 = vst [vmem:[#allocation2 + $0x18] sm:$0xff] 0.0
      %94 = vst [vmem:[#allocation2 + $0x20] sm:$0xff] 0.0
      %95 = vst [vmem:[#allocation2 + $0x28] sm:$0xff] 0.0
      %96 = vst [vmem:[#allocation2 + $0x30] sm:$0xff] 0.0
      %97 = vst [vmem:[#allocation2 + $0x38] sm:$0xff] 0.0
      %98 = vst [vmem:[#allocation2 + $0x40] sm:$0xff] 0.0
      %99 = vst [vmem:[#allocation2 + $0x48] sm:$0xff] 0.0
      %100 = vst [vmem:[#allocation2 + $0x50] sm:$0xff] 0.0
      %101 = vst [vmem:[#allocation2 + $0x58] sm:$0xff] 0.0
      %102 = vst [vmem:[#allocation2 + $0x60] sm:$0xff] 0.0
      %103 = vst [vmem:[#allocation2 + $0x68] sm:$0xff] 0.0
      %104 = vst [vmem:[#allocation2 + $0x70] sm:$0xff] 0.0
      %105 = vst [vmem:[#allocation2 + $0x78] sm:$0xff] 0.0
    $region53: #{tpu_custom_call.1} parent=1 // pred_fallthru
      _
    %v106 = vld [vmem:[#allocation2] sm:$0xff]
    %v107 = vld [vmem:[#allocation2 + $0x8] sm:$0xff]
    %v108 = vld [vmem:[#allocation2 + $0x10] sm:$0xff]
    %v109 = vld [vmem:[#allocation2 + $0x18] sm:$0xff]
    %v110 = vld [vmem:[#allocation2 + $0x20] sm:$0xff]
    %v111 = vld [vmem:[#allocation2 + $0x28] sm:$0xff]
    %v112 = vld [vmem:[#allocation2 + $0x30] sm:$0xff]
    %v113 = vld [vmem:[#allocation2 + $0x38] sm:$0xff]
    %v114 = vld [vmem:[#allocation2 + $0x40] sm:$0xff]
    %v115 = vld [vmem:[#allocation2 + $0x48] sm:$0xff]
    %v116 = vld [vmem:[#allocation2 + $0x50] sm:$0xff]
    %v117 = vld [vmem:[#allocation2 + $0x58] sm:$0xff]
    %v118 = vld [vmem:[#allocation2 + $0x60] sm:$0xff]
    %v119 = vld [vmem:[#allocation2 + $0x68] sm:$0xff]
    %v120 = vld [vmem:[#allocation2 + $0x70] sm:$0xff]
    %v121 = vld [vmem:[#allocation2 + $0x78] sm:$0xff]
    %v122 = vld [vmem:[#allocation3] sm:$0xf]
    %v123 = vld [vmem:[#allocation3 + $0x4] sm:$0xf]
    %v124 = vld [vmem:[#allocation3 + $0x8] sm:$0xf]
    %v125 = vld [vmem:[#allocation3 + $0xc] sm:$0xf]
    %v126 = vld [vmem:[#allocation3 + $0x10] sm:$0xf]
    %v127 = vld [vmem:[#allocation3 + $0x14] sm:$0xf]
    %v128 = vld [vmem:[#allocation3 + $0x18] sm:$0xf]
    %v129 = vld [vmem:[#allocation3 + $0x1c] sm:$0xf]
    %v130 = vld [vmem:[#allocation3 + $0x20] sm:$0xf]
    %v131 = vld [vmem:[#allocation3 + $0x24] sm:$0xf]
    %v132 = vld [vmem:[#allocation3 + $0x28] sm:$0xf]
    %v133 = vld [vmem:[#allocation3 + $0x2c] sm:$0xf]
    %v134 = vld [vmem:[#allocation3 + $0x30] sm:$0xf]
    %v135 = vld [vmem:[#allocation3 + $0x34] sm:$0xf]
    %v136 = vld [vmem:[#allocation3 + $0x38] sm:$0xf]
    %v137 = vld [vmem:[#allocation3 + $0x3c] sm:$0xf]
    %v138 = vld [vmem:[#allocation6] sm:$0xf]
    %v139 = vld [vmem:[#allocation6 + $0x4] sm:$0xf]
    %v140 = vld [vmem:[#allocation6 + $0x8] sm:$0xf]
    %v141 = vld [vmem:[#allocation6 + $0xc] sm:$0xf]
    %v142 = vld [vmem:[#allocation6 + $0x10] sm:$0xf]
    %v143 = vld [vmem:[#allocation6 + $0x14] sm:$0xf]
    %v144 = vld [vmem:[#allocation6 + $0x18] sm:$0xf]
    %v145 = vld [vmem:[#allocation6 + $0x1c] sm:$0xf]
    %v146 = vld [vmem:[#allocation6 + $0x20] sm:$0xf]
    %v147 = vld [vmem:[#allocation6 + $0x24] sm:$0xf]
    %v148 = vld [vmem:[#allocation6 + $0x28] sm:$0xf]
    %v149 = vld [vmem:[#allocation6 + $0x2c] sm:$0xf]
    %v150 = vld [vmem:[#allocation6 + $0x30] sm:$0xf]
    %v151 = vld [vmem:[#allocation6 + $0x34] sm:$0xf]
    %v152 = vld [vmem:[#allocation6 + $0x38] sm:$0xf]
    %v153 = vld [vmem:[#allocation6 + $0x3c] sm:$0xf]
    %v170 = vunpack.c.l.b16 %v122
    %v171 = vunpack.c.l.b16 %v123
    %v172 = vunpack.c.l.b16 %v124
    %v173 = vunpack.c.l.b16 %v125
    %v174 = vunpack.c.l.b16 %v126
    %v175 = vunpack.c.l.b16 %v127
    %v176 = vunpack.c.l.b16 %v128
    %v177 = vunpack.c.l.b16 %v129
    %v178 = vunpack.c.l.b16 %v130
    %v179 = vunpack.c.l.b16 %v131
    %v180 = vunpack.c.l.b16 %v132
    %v181 = vunpack.c.l.b16 %v133
    %v182 = vunpack.c.l.b16 %v134
    %v183 = vunpack.c.l.b16 %v135
    %v184 = vunpack.c.l.b16 %v136
    %v185 = vunpack.c.l.b16 %v137
    %v186 = vpack.c.b16 %v171, %v170
    %v187 = vpack.c.b16 %v173, %v172
    %v188 = vpack.c.b16 %v175, %v174
    %v189 = vpack.c.b16 %v177, %v176
    %v190 = vpack.c.b16 %v179, %v178
    %v191 = vpack.c.b16 %v181, %v180
    %v192 = vpack.c.b16 %v183, %v182
    %v193 = vpack.c.b16 %v185, %v184
    %v218 = vunpack.c.l.b16 %v138
    %v219 = vunpack.c.l.b16 %v139
    %v220 = vunpack.c.l.b16 %v140
    %v221 = vunpack.c.l.b16 %v141
    %v222 = vunpack.c.l.b16 %v142
    %v223 = vunpack.c.l.b16 %v143
    %v224 = vunpack.c.l.b16 %v144
    %v225 = vunpack.c.l.b16 %v145
    %v226 = vunpack.c.l.b16 %v146
    %v227 = vunpack.c.l.b16 %v147
    %v228 = vunpack.c.l.b16 %v148
    %v229 = vunpack.c.l.b16 %v149
    %v230 = vunpack.c.l.b16 %v150
    %v231 = vunpack.c.l.b16 %v151
    %v232 = vunpack.c.l.b16 %v152
    %v233 = vunpack.c.l.b16 %v153
    %v234 = vpack.c.b16 %v219, %v218
    %v235 = vpack.c.b16 %v221, %v220
    %v236 = vpack.c.b16 %v223, %v222
    %v237 = vpack.c.b16 %v225, %v224
    %v238 = vpack.c.b16 %v227, %v226
    %v239 = vpack.c.b16 %v229, %v228
    %v240 = vpack.c.b16 %v231, %v230
    %v241 = vpack.c.b16 %v233, %v232
    %250 = vmatprep.subr.bf16.mxu0 0
    %251 = vmatpush1.bf16.msra.mxu0 %v234
    %252 = vmatprep.subr.bf16.mxu0 0
    %253 = vmatpush1.bf16.msra.mxu0 %v235
    %254 = vmatprep.subr.bf16.mxu0 0
    %255 = vmatpush1.bf16.msra.mxu0 %v236
    %256 = vmatprep.subr.bf16.mxu0 0
    %257 = vmatpush1.bf16.msra.mxu0 %v237
    %258 = vmatprep.subr.bf16.mxu0 0
    %259 = vmatpush1.bf16.msra.mxu0 %v238
    %260 = vmatprep.subr.bf16.mxu0 0
    %261 = vmatpush1.bf16.msra.mxu0 %v239
    %262 = vmatprep.subr.bf16.mxu0 0
    %263 = vmatpush1.bf16.msra.mxu0 %v240
    %264 = vmatprep.subr.bf16.mxu0 0
    %265 = vmatpush1.bf16.msra.mxu0 %v241
    %266 = vmatprep.subr.bf16.mxu0 0
    %267 = vmatpush1.bf16.msra.mxu0 0
    %268 = vmatprep.subr.bf16.mxu0 0
    %269 = vmatpush1.bf16.msra.mxu0 0
    %270 = vmatprep.subr.bf16.mxu0 0
    %271 = vmatpush1.bf16.msra.mxu0 0
    %272 = vmatprep.subr.bf16.mxu0 0
    %273 = vmatpush1.bf16.msra.mxu0 0
    %274 = vmatprep.subr.bf16.mxu0 0
    %275 = vmatpush1.bf16.msra.mxu0 0
    %276 = vmatprep.subr.bf16.mxu0 0
    %277 = vmatpush1.bf16.msra.mxu0 0
    %278 = vmatprep.subr.bf16.mxu0 0
    %279 = vmatpush1.bf16.msra.mxu0 0
    %280 = vmatprep.subr.bf16.mxu0 0
    %281 = vmatpush1.bf16.msra.mxu0 0
    %282 = vmatprep.mubr.bf16.mxu0 0
    %283 = vmatmul.mubr.bf16.gmra.mrb[0].mxu0 %v186
    %v284 = vpop.f32.mrb[0].mxu0
    %v285 = vadd.f32 0.0, %v284
    %v286 = vpop.f32.mrb[0].mxu0
    %v287 = vpop.f32.mrb[0].mxu0
    %v288 = vadd.f32 0.0, %v287
    %v289 = vpop.f32.mrb[0].mxu0
    %290 = vmatprep.mubr.bf16.mxu0 0
    %291 = vmatmul.mubr.bf16.gmra.mrb[0].mxu0 %v187
    %v292 = vpop.f32.mrb[0].mxu0
    %v293 = vadd.f32 0.0, %v292
    %v294 = vpop.f32.mrb[0].mxu0
    %v295 = vpop.f32.mrb[0].mxu0
    %v296 = vadd.f32 0.0, %v295
    %v297 = vpop.f32.mrb[0].mxu0
    %298 = vmatprep.mubr.bf16.mxu0 0
    %299 = vmatmul.mubr.bf16.gmra.mrb[0].mxu0 %v188
    %v300 = vpop.f32.mrb[0].mxu0
    %v301 = vadd.f32 0.0, %v300
    %v302 = vpop.f32.mrb[0].mxu0
    %v303 = vpop.f32.mrb[0].mxu0
    %v304 = vadd.f32 0.0, %v303
    %v305 = vpop.f32.mrb[0].mxu0
    %306 = vmatprep.mubr.bf16.mxu0 0
    %307 = vmatmul.mubr.bf16.gmra.mrb[0].mxu0 %v189
    %v308 = vpop.f32.mrb[0].mxu0
    %v309 = vadd.f32 0.0, %v308
    %v310 = vpop.f32.mrb[0].mxu0
    %v311 = vpop.f32.mrb[0].mxu0
    %v312 = vadd.f32 0.0, %v311
    %v313 = vpop.f32.mrb[0].mxu0
    %314 = vmatprep.mubr.bf16.mxu0 0
    %315 = vmatmul.mubr.bf16.gmra.mrb[0].mxu0 %v190
    %v316 = vpop.f32.mrb[0].mxu0
    %v317 = vadd.f32 0.0, %v316
    %v318 = vpop.f32.mrb[0].mxu0
    %v319 = vpop.f32.mrb[0].mxu0
    %v320 = vadd.f32 0.0, %v319
    %v321 = vpop.f32.mrb[0].mxu0
    %322 = vmatprep.mubr.bf16.mxu0 0
    %323 = vmatmul.mubr.bf16.gmra.mrb[0].mxu0 %v191
    %v324 = vpop.f32.mrb[0].mxu0
    %v325 = vadd.f32 0.0, %v324
    %v326 = vpop.f32.mrb[0].mxu0
    %v327 = vpop.f32.mrb[0].mxu0
    %v328 = vadd.f32 0.0, %v327
    %v329 = vpop.f32.mrb[0].mxu0
    %330 = vmatprep.mubr.bf16.mxu0 0
    %331 = vmatmul.mubr.bf16.gmra.mrb[0].mxu0 %v192
    %v332 = vpop.f32.mrb[0].mxu0
    %v333 = vadd.f32 0.0, %v332
    %v334 = vpop.f32.mrb[0].mxu0
    %v335 = vpop.f32.mrb[0].mxu0
    %v336 = vadd.f32 0.0, %v335
    %v337 = vpop.f32.mrb[0].mxu0
    %338 = vmatprep.mubr.bf16.mxu0 0
    %339 = vmatmul.mubr.bf16.gmra.mrb[0].mxu0 %v193
    %v340 = vpop.f32.mrb[0].mxu0
    %v341 = vadd.f32 0.0, %v340
    %v342 = vpop.f32.mrb[0].mxu0
    %v343 = vpop.f32.mrb[0].mxu0
    %v344 = vadd.f32 0.0, %v343
    %v345 = vpop.f32.mrb[0].mxu0
    %346 = vdwg.mxu0
    %v347 = vadd.f32 %v106, %v285
    %v348 = vadd.f32 %v107, %v288
    %v349 = vadd.f32 %v108, %v293
    %v350 = vadd.f32 %v109, %v296
    %v351 = vadd.f32 %v110, %v301
    %v352 = vadd.f32 %v111, %v304
    %v353 = vadd.f32 %v112, %v309
    %v354 = vadd.f32 %v113, %v312
    %v355 = vadd.f32 %v114, %v317
    %v356 = vadd.f32 %v115, %v320
    %v357 = vadd.f32 %v116, %v325
    %v358 = vadd.f32 %v117, %v328
    %v359 = vadd.f32 %v118, %v333
    %v360 = vadd.f32 %v119, %v336
    %v361 = vadd.f32 %v120, %v341
    %v362 = vadd.f32 %v121, %v344
    %363 = vst [vmem:[#allocation2] sm:$0xff] %v347
    %364 = vst [vmem:[#allocation2 + $0x8] sm:$0xff] %v348
    %365 = vst [vmem:[#allocation2 + $0x10] sm:$0xff] %v349
    %366 = vst [vmem:[#allocation2 + $0x18] sm:$0xff] %v350
    %367 = vst [vmem:[#allocation2 + $0x20] sm:$0xff] %v351
    %368 = vst [vmem:[#allocation2 + $0x28] sm:$0xff] %v352
    %369 = vst [vmem:[#allocation2 + $0x30] sm:$0xff] %v353
    %370 = vst [vmem:[#allocation2 + $0x38] sm:$0xff] %v354
    %371 = vst [vmem:[#allocation2 + $0x40] sm:$0xff] %v355
    %372 = vst [vmem:[#allocation2 + $0x48] sm:$0xff] %v356
    %373 = vst [vmem:[#allocation2 + $0x50] sm:$0xff] %v357
    %374 = vst [vmem:[#allocation2 + $0x58] sm:$0xff] %v358
    %375 = vst [vmem:[#allocation2 + $0x60] sm:$0xff] %v359
    %376 = vst [vmem:[#allocation2 + $0x68] sm:$0xff] %v360
    %377 = vst [vmem:[#allocation2 + $0x70] sm:$0xff] %v361
    %378 = vst [vmem:[#allocation2 + $0x78] sm:$0xff] %v362
    // Predicated region
    $region54: #{tpu_custom_call.1} parent=1 // pred_check
      %p379 = pneg %p86
    $region55: #{tpu_custom_call.1} parent=1 // pred_check_branch
      %381 = sbr.rel (%p379) target = $region57
    $region56: #{tpu_custom_call.1} parent=1 // pred_region
      %v382 = vld [vmem:[%s3] sm:$0xff]
      %v383 = vld [vmem:[%s3 + $0x8] sm:$0xff]
      %v384 = vld [vmem:[%s3 + $0x10] sm:$0xff]
      %v385 = vld [vmem:[%s3 + $0x18] sm:$0xff]
      %v386 = vld [vmem:[%s3 + $0x20] sm:$0xff]
      %v387 = vld [vmem:[%s3 + $0x28] sm:$0xff]
      %v388 = vld [vmem:[%s3 + $0x30] sm:$0xff]
      %v389 = vld [vmem:[%s3 + $0x38] sm:$0xff]
      %v390 = vld [vmem:[%s3 + $0x40] sm:$0xff]
      %v391 = vld [vmem:[%s3 + $0x48] sm:$0xff]
      %v392 = vld [vmem:[%s3 + $0x50] sm:$0xff]
      %v393 = vld [vmem:[%s3 + $0x58] sm:$0xff]
      %v394 = vld [vmem:[%s3 + $0x60] sm:$0xff]
      %v395 = vld [vmem:[%s3 + $0x68] sm:$0xff]
      %v396 = vld [vmem:[%s3 + $0x70] sm:$0xff]
      %v397 = vld [vmem:[%s3 + $0x78] sm:$0xff]
      %v398 = vld [vmem:[#allocation8] sm:$0xf]
      %v399 = vld [vmem:[#allocation8 + $0x4] sm:$0xf]
      %v400 = vld [vmem:[#allocation8 + $0x8] sm:$0xf]
      %v401 = vld [vmem:[#allocation8 + $0xc] sm:$0xf]
      %v402 = vld [vmem:[#allocation8 + $0x10] sm:$0xf]
      %v403 = vld [vmem:[#allocation8 + $0x14] sm:$0xf]
      %v404 = vld [vmem:[#allocation8 + $0x18] sm:$0xf]
      %v405 = vld [vmem:[#allocation8 + $0x1c] sm:$0xf]
      %v406 = vld [vmem:[#allocation8 + $0x20] sm:$0xf]
      %v407 = vld [vmem:[#allocation8 + $0x24] sm:$0xf]
      %v408 = vld [vmem:[#allocation8 + $0x28] sm:$0xf]
      %v409 = vld [vmem:[#allocation8 + $0x2c] sm:$0xf]
      %v410 = vld [vmem:[#allocation8 + $0x30] sm:$0xf]
      %v411 = vld [vmem:[#allocation8 + $0x34] sm:$0xf]
      %v412 = vld [vmem:[#allocation8 + $0x38] sm:$0xf]
      %v413 = vld [vmem:[#allocation8 + $0x3c] sm:$0xf]
      %v414 = vunpack.c.l.bf16 %v398
      %v415 = vunpack.c.l.bf16 %v399
      %v416 = vunpack.c.l.bf16 %v400
      %v417 = vunpack.c.l.bf16 %v401
      %v418 = vunpack.c.l.bf16 %v402
      %v419 = vunpack.c.l.bf16 %v403
      %v420 = vunpack.c.l.bf16 %v404
      %v421 = vunpack.c.l.bf16 %v405
      %v422 = vunpack.c.l.bf16 %v406
      %v423 = vunpack.c.l.bf16 %v407
      %v424 = vunpack.c.l.bf16 %v408
      %v425 = vunpack.c.l.bf16 %v409
      %v426 = vunpack.c.l.bf16 %v410
      %v427 = vunpack.c.l.bf16 %v411
      %v428 = vunpack.c.l.bf16 %v412
      %v429 = vunpack.c.l.bf16 %v413
      %v430 = vld [vmem:[#allocation2] sm:$0xff]
      %v431 = vld [vmem:[#allocation2 + $0x8] sm:$0xff]
      %v432 = vld [vmem:[#allocation2 + $0x10] sm:$0xff]
      %v433 = vld [vmem:[#allocation2 + $0x18] sm:$0xff]
      %v434 = vld [vmem:[#allocation2 + $0x20] sm:$0xff]
      %v435 = vld [vmem:[#allocation2 + $0x28] sm:$0xff]
      %v436 = vld [vmem:[#allocation2 + $0x30] sm:$0xff]
      %v437 = vld [vmem:[#allocation2 + $0x38] sm:$0xff]
      %v438 = vld [vmem:[#allocation2 + $0x40] sm:$0xff]
      %v439 = vld [vmem:[#allocation2 + $0x48] sm:$0xff]
      %v440 = vld [vmem:[#allocation2 + $0x50] sm:$0xff]
      %v441 = vld [vmem:[#allocation2 + $0x58] sm:$0xff]
      %v442 = vld [vmem:[#allocation2 + $0x60] sm:$0xff]
      %v443 = vld [vmem:[#allocation2 + $0x68] sm:$0xff]
      %v444 = vld [vmem:[#allocation2 + $0x70] sm:$0xff]
      %v445 = vld [vmem:[#allocation2 + $0x78] sm:$0xff]
      %v446 = vadd.f32 %v430, %v414
      %v447 = vadd.f32 %v431, %v415
      %v448 = vadd.f32 %v432, %v416
      %v449 = vadd.f32 %v433, %v417
      %v450 = vadd.f32 %v434, %v418
      %v451 = vadd.f32 %v435, %v419
      %v452 = vadd.f32 %v436, %v420
      %v453 = vadd.f32 %v437, %v421
      %v454 = vadd.f32 %v438, %v422
      %v455 = vadd.f32 %v439, %v423
      %v456 = vadd.f32 %v440, %v424
      %v457 = vadd.f32 %v441, %v425
      %v458 = vadd.f32 %v442, %v426
      %v459 = vadd.f32 %v443, %v427
      %v460 = vadd.f32 %v444, %v428
      %v461 = vadd.f32 %v445, %v429
      %463 = vset.pattern.permute.xlu0 0
      %464 = vperm.xlu0 %463, %v382
      %v465 = vpop.permute.xlu0 %464
      %468 = vset.pattern.permute.xlu0 0
      %469 = vperm.xlu0 %468, %v383
      %v470 = vpop.permute.xlu0 %469
      %473 = vset.pattern.permute.xlu0 0
      %474 = vperm.xlu0 %473, %v384
      %v475 = vpop.permute.xlu0 %474
      %478 = vset.pattern.permute.xlu0 0
      %479 = vperm.xlu0 %478, %v385
      %v480 = vpop.permute.xlu0 %479
      %483 = vset.pattern.permute.xlu0 0
      %484 = vperm.xlu0 %483, %v386
      %v485 = vpop.permute.xlu0 %484
      %488 = vset.pattern.permute.xlu0 0
      %489 = vperm.xlu0 %488, %v387
      %v490 = vpop.permute.xlu0 %489
      %493 = vset.pattern.permute.xlu0 0
      %494 = vperm.xlu0 %493, %v388
      %v495 = vpop.permute.xlu0 %494
      %498 = vset.pattern.permute.xlu0 0
      %499 = vperm.xlu0 %498, %v389
      %v500 = vpop.permute.xlu0 %499
      %503 = vset.pattern.permute.xlu0 0
      %504 = vperm.xlu0 %503, %v390
      %v505 = vpop.permute.xlu0 %504
      %508 = vset.pattern.permute.xlu0 0
      %509 = vperm.xlu0 %508, %v391
      %v510 = vpop.permute.xlu0 %509
      %513 = vset.pattern.permute.xlu0 0
      %514 = vperm.xlu0 %513, %v392
      %v515 = vpop.permute.xlu0 %514
      %518 = vset.pattern.permute.xlu0 0
      %519 = vperm.xlu0 %518, %v393
      %v520 = vpop.permute.xlu0 %519
      %523 = vset.pattern.permute.xlu0 0
      %524 = vperm.xlu0 %523, %v394
      %v525 = vpop.permute.xlu0 %524
      %528 = vset.pattern.permute.xlu0 0
      %529 = vperm.xlu0 %528, %v395
      %v530 = vpop.permute.xlu0 %529
      %533 = vset.pattern.permute.xlu0 0
      %534 = vperm.xlu0 %533, %v396
      %v535 = vpop.permute.xlu0 %534
      %538 = vset.pattern.permute.xlu0 0
      %539 = vperm.xlu0 %538, %v397
      %v540 = vpop.permute.xlu0 %539
      %v542 = vmul.f32 %v465, %v446
      %v543 = vmul.f32 %v470, %v447
      %v544 = vmul.f32 %v475, %v448
      %v545 = vmul.f32 %v480, %v449
      %v546 = vmul.f32 %v485, %v450
      %v547 = vmul.f32 %v490, %v451
      %v548 = vmul.f32 %v495, %v452
      %v549 = vmul.f32 %v500, %v453
      %v550 = vmul.f32 %v505, %v454
      %v551 = vmul.f32 %v510, %v455
      %v552 = vmul.f32 %v515, %v456
      %v553 = vmul.f32 %v520, %v457
      %v554 = vmul.f32 %v525, %v458
      %v555 = vmul.f32 %v530, %v459
      %v556 = vmul.f32 %v535, %v460
      %v557 = vmul.f32 %v540, %v461
      %v558 = vld [vmem:[%s4] sm:$0xff]
      %v559 = vld [vmem:[%s4 + $0x8] sm:$0xff]
      %v560 = vld [vmem:[%s4 + $0x10] sm:$0xff]
      %v561 = vld [vmem:[%s4 + $0x18] sm:$0xff]
      %v562 = vld [vmem:[%s4 + $0x20] sm:$0xff]
      %v563 = vld [vmem:[%s4 + $0x28] sm:$0xff]
      %v564 = vld [vmem:[%s4 + $0x30] sm:$0xff]
      %v565 = vld [vmem:[%s4 + $0x38] sm:$0xff]
      %v566 = vld [vmem:[%s4 + $0x40] sm:$0xff]
      %v567 = vld [vmem:[%s4 + $0x48] sm:$0xff]
      %v568 = vld [vmem:[%s4 + $0x50] sm:$0xff]
      %v569 = vld [vmem:[%s4 + $0x58] sm:$0xff]
      %v570 = vld [vmem:[%s4 + $0x60] sm:$0xff]
      %v571 = vld [vmem:[%s4 + $0x68] sm:$0xff]
      %v572 = vld [vmem:[%s4 + $0x70] sm:$0xff]
      %v573 = vld [vmem:[%s4 + $0x78] sm:$0xff]
      %v574 = vld [vmem:[%s5] sm:$0x1]
      %v576 = vlaneseq
      %v577 = vshrl.u32 %v576, 7
      %v578 = vsub.s32 0, %v577
      %v579 = vrot.slane %v574, %v578
      %581 = vmatprep.subr.mxu0 0.0
      %582 = vmatpush1.msra.mxu0 %v558
      %583 = vmatprep.subr.mxu0 0.0
      %584 = vmatpush1.msra.mxu0 %v559
      %585 = vmatprep.subr.mxu0 0.0
      %586 = vmatpush1.msra.mxu0 %v560
      %587 = vmatprep.subr.mxu0 0.0
      %588 = vmatpush1.msra.mxu0 %v561
      %589 = vmatprep.subr.mxu0 0.0
      %590 = vmatpush1.msra.mxu0 %v562
      %591 = vmatprep.subr.mxu0 0.0
      %592 = vmatpush1.msra.mxu0 %v563
      %593 = vmatprep.subr.mxu0 0.0
      %594 = vmatpush1.msra.mxu0 %v564
      %595 = vmatprep.subr.mxu0 0.0
      %596 = vmatpush1.msra.mxu0 %v565
      %597 = vmatprep.subr.mxu0 0.0
      %598 = vmatpush1.msra.mxu0 %v566
      %599 = vmatprep.subr.mxu0 0.0
      %600 = vmatpush1.msra.mxu0 %v567
      %601 = vmatprep.subr.mxu0 0.0
      %602 = vmatpush1.msra.mxu0 %v568
      %603 = vmatprep.subr.mxu0 0.0
      %604 = vmatpush1.msra.mxu0 %v569
      %605 = vmatprep.subr.mxu0 0.0
      %606 = vmatpush1.msra.mxu0 %v570
      %607 = vmatprep.subr.mxu0 0.0
      %608 = vmatpush1.msra.mxu0 %v571
      %609 = vmatprep.subr.mxu0 0.0
      %610 = vmatpush1.msra.mxu0 %v572
      %611 = vmatprep.subr.mxu0 0.0
      %612 = vmatpush1.msra.mxu0 %v573
      %613 = vmatprep.subr.mxu0 0.0
      %614 = vmatpush1.msra.mxu0 0.0
      %615 = vmatprep.subr.mxu0 0.0
      %616 = vmatpush1.msra.mxu0 0.0
      %617 = vmatprep.subr.mxu0 0.0
      %618 = vmatpush1.msra.mxu0 0.0
      %619 = vmatprep.subr.mxu0 0.0
      %620 = vmatpush1.msra.mxu0 0.0
      %621 = vmatprep.subr.mxu0 0.0
      %622 = vmatpush1.msra.mxu0 0.0
      %623 = vmatprep.subr.mxu0 0.0
      %624 = vmatpush1.msra.mxu0 0.0
      %625 = vmatprep.subr.mxu0 0.0
      %626 = vmatpush1.msra.mxu0 0.0
      %627 = vmatprep.subr.mxu0 0.0
      %628 = vmatpush1.msra.mxu0 0.0
      %629 = vmatprep.subr.mxu0 0.0
      %630 = vmatpush1.msra.mxu0 0.0
      %631 = vmatprep.subr.mxu0 0.0
      %632 = vmatpush1.msra.mxu0 0.0
      %633 = vmatprep.subr.mxu0 0.0
      %634 = vmatpush1.msra.mxu0 0.0
      %635 = vmatprep.subr.mxu0 0.0
      %636 = vmatpush1.msra.mxu0 0.0
      %637 = vmatprep.subr.mxu0 0.0
      %638 = vmatpush1.msra.mxu0 0.0
      %639 = vmatprep.subr.mxu0 0.0
      %640 = vmatpush1.msra.mxu0 0.0
      %641 = vmatprep.subr.mxu0 0.0
      %642 = vmatpush1.msra.mxu0 0.0
      %643 = vmatprep.subr.mxu0 0.0
      %644 = vmatpush1.msra.mxu0 0.0
      %645 = vmatprep.mubr.f32.mxu0 0.0
      %646 = vmatmul.mubr.f32.gmra.mrb[0].mxu0 %v542
      %v647 = vpop.f32.mrb[0].mxu0
      %v648 = vadd.f32 %v579, %v647
      %v649 = vpop.f32.mrb[0].mxu0
      %650 = vmatprep.mubr.f32.mxu0 0.0
      %651 = vmatmul.mubr.f32.gmra.mrb[0].mxu0 %v543
      %v652 = vpop.f32.mrb[0].mxu0
      %v653 = vadd.f32 %v579, %v652
      %v654 = vpop.f32.mrb[0].mxu0
      %655 = vmatprep.mubr.f32.mxu0 0.0
      %656 = vmatmul.mubr.f32.gmra.mrb[0].mxu0 %v544
      %v657 = vpop.f32.mrb[0].mxu0
      %v658 = vadd.f32 %v579, %v657
      %v659 = vpop.f32.mrb[0].mxu0
      %660 = vmatprep.mubr.f32.mxu0 0.0
      %661 = vmatmul.mubr.f32.gmra.mrb[0].mxu0 %v545
      %v662 = vpop.f32.mrb[0].mxu0
      %v663 = vadd.f32 %v579, %v662
      %v664 = vpop.f32.mrb[0].mxu0
      %665 = vmatprep.mubr.f32.mxu0 0.0
      %666 = vmatmul.mubr.f32.gmra.mrb[0].mxu0 %v546
      %v667 = vpop.f32.mrb[0].mxu0
      %v668 = vadd.f32 %v579, %v667
      %v669 = vpop.f32.mrb[0].mxu0
      %670 = vmatprep.mubr.f32.mxu0 0.0
      %671 = vmatmul.mubr.f32.gmra.mrb[0].mxu0 %v547
      %v672 = vpop.f32.mrb[0].mxu0
      %v673 = vadd.f32 %v579, %v672
      %v674 = vpop.f32.mrb[0].mxu0
      %675 = vmatprep.mubr.f32.mxu0 0.0
      %676 = vmatmul.mubr.f32.gmra.mrb[0].mxu0 %v548
      %v677 = vpop.f32.mrb[0].mxu0
      %v678 = vadd.f32 %v579, %v677
      %v679 = vpop.f32.mrb[0].mxu0
      %680 = vmatprep.mubr.f32.mxu0 0.0
      %681 = vmatmul.mubr.f32.gmra.mrb[0].mxu0 %v549
      %v682 = vpop.f32.mrb[0].mxu0
      %v683 = vadd.f32 %v579, %v682
      %v684 = vpop.f32.mrb[0].mxu0
      %685 = vmatprep.mubr.f32.mxu0 0.0
      %686 = vmatmul.mubr.f32.gmra.mrb[0].mxu0 %v550
      %v687 = vpop.f32.mrb[0].mxu0
      %v688 = vadd.f32 %v579, %v687
      %v689 = vpop.f32.mrb[0].mxu0
      %690 = vmatprep.mubr.f32.mxu0 0.0
      %691 = vmatmul.mubr.f32.gmra.mrb[0].mxu0 %v551
      %v692 = vpop.f32.mrb[0].mxu0
      %v693 = vadd.f32 %v579, %v692
      %v694 = vpop.f32.mrb[0].mxu0
      %695 = vmatprep.mubr.f32.mxu0 0.0
      %696 = vmatmul.mubr.f32.gmra.mrb[0].mxu0 %v552
      %v697 = vpop.f32.mrb[0].mxu0
      %v698 = vadd.f32 %v579, %v697
      %v699 = vpop.f32.mrb[0].mxu0
      %700 = vmatprep.mubr.f32.mxu0 0.0
      %701 = vmatmul.mubr.f32.gmra.mrb[0].mxu0 %v553
      %v702 = vpop.f32.mrb[0].mxu0
      %v703 = vadd.f32 %v579, %v702
      %v704 = vpop.f32.mrb[0].mxu0
      %705 = vmatprep.mubr.f32.mxu0 0.0
      %706 = vmatmul.mubr.f32.gmra.mrb[0].mxu0 %v554
      %v707 = vpop.f32.mrb[0].mxu0
      %v708 = vadd.f32 %v579, %v707
      %v709 = vpop.f32.mrb[0].mxu0
      %710 = vmatprep.mubr.f32.mxu0 0.0
      %711 = vmatmul.mubr.f32.gmra.mrb[0].mxu0 %v555
      %v712 = vpop.f32.mrb[0].mxu0
      %v713 = vadd.f32 %v579, %v712
      %v714 = vpop.f32.mrb[0].mxu0
      %715 = vmatprep.mubr.f32.mxu0 0.0
      %716 = vmatmul.mubr.f32.gmra.mrb[0].mxu0 %v556
      %v717 = vpop.f32.mrb[0].mxu0
      %v718 = vadd.f32 %v579, %v717
      %v719 = vpop.f32.mrb[0].mxu0
      %720 = vmatprep.mubr.f32.mxu0 0.0
      %721 = vmatmul.mubr.f32.gmra.mrb[0].mxu0 %v557
      %v722 = vpop.f32.mrb[0].mxu0
      %v723 = vadd.f32 %v579, %v722
      %v724 = vpop.f32.mrb[0].mxu0
      %725 = vdwg.mxu0
      %v726 = vmax.f32 %v648, 0.0
      %v727 = vmax.f32 %v653, 0.0
      %v728 = vmax.f32 %v658, 0.0
      %v729 = vmax.f32 %v663, 0.0
      %v730 = vmax.f32 %v668, 0.0
      %v731 = vmax.f32 %v673, 0.0
      %v732 = vmax.f32 %v678, 0.0
      %v733 = vmax.f32 %v683, 0.0
      %v734 = vmax.f32 %v688, 0.0
      %v735 = vmax.f32 %v693, 0.0
      %v736 = vmax.f32 %v698, 0.0
      %v737 = vmax.f32 %v703, 0.0
      %v738 = vmax.f32 %v708, 0.0
      %v739 = vmax.f32 %v713, 0.0
      %v740 = vmax.f32 %v718, 0.0
      %v741 = vmax.f32 %v723, 0.0
      %v742 = vld [vmem:[#allocation9] sm:$0xff]
      %v743 = vld [vmem:[#allocation9 + $0x8] sm:$0xff]
      %v744 = vld [vmem:[#allocation9 + $0x10] sm:$0xff]
      %v745 = vld [vmem:[#allocation9 + $0x18] sm:$0xff]
      %v746 = vld [vmem:[#allocation9 + $0x20] sm:$0xff]
      %v747 = vld [vmem:[#allocation9 + $0x28] sm:$0xff]
      %v748 = vld [vmem:[#allocation9 + $0x30] sm:$0xff]
      %v749 = vld [vmem:[#allocation9 + $0x38] sm:$0xff]
      %v750 = vld [vmem:[#allocation9 + $0x40] sm:$0xff]
      %v751 = vld [vmem:[#allocation9 + $0x48] sm:$0xff]
      %v752 = vld [vmem:[#allocation9 + $0x50] sm:$0xff]
      %v753 = vld [vmem:[#allocation9 + $0x58] sm:$0xff]
      %v754 = vld [vmem:[#allocation9 + $0x60] sm:$0xff]
      %v755 = vld [vmem:[#allocation9 + $0x68] sm:$0xff]
      %v756 = vld [vmem:[#allocation9 + $0x70] sm:$0xff]
      %v757 = vld [vmem:[#allocation9 + $0x78] sm:$0xff]
      %v758 = vld [vmem:[%s7] sm:$0x1]
      %v760 = vlaneseq
      %v761 = vshrl.u32 %v760, 7
      %v762 = vsub.s32 0, %v761
      %v763 = vrot.slane %v758, %v762
      %765 = vmatprep.subr.mxu0 0.0
      %766 = vmatpush1.msra.mxu0 %v742
      %767 = vmatprep.subr.mxu0 0.0
      %768 = vmatpush1.msra.mxu0 %v743
      %769 = vmatprep.subr.mxu0 0.0
      %770 = vmatpush1.msra.mxu0 %v744
      %771 = vmatprep.subr.mxu0 0.0
      %772 = vmatpush1.msra.mxu0 %v745
      %773 = vmatprep.subr.mxu0 0.0
      %774 = vmatpush1.msra.mxu0 %v746
      %775 = vmatprep.subr.mxu0 0.0
      %776 = vmatpush1.msra.mxu0 %v747
      %777 = vmatprep.subr.mxu0 0.0
      %778 = vmatpush1.msra.mxu0 %v748
      %779 = vmatprep.subr.mxu0 0.0
      %780 = vmatpush1.msra.mxu0 %v749
      %781 = vmatprep.subr.mxu0 0.0
      %782 = vmatpush1.msra.mxu0 %v750
      %783 = vmatprep.subr.mxu0 0.0
      %784 = vmatpush1.msra.mxu0 %v751
      %785 = vmatprep.subr.mxu0 0.0
      %786 = vmatpush1.msra.mxu0 %v752
      %787 = vmatprep.subr.mxu0 0.0
      %788 = vmatpush1.msra.mxu0 %v753
      %789 = vmatprep.subr.mxu0 0.0
      %790 = vmatpush1.msra.mxu0 %v754
      %791 = vmatprep.subr.mxu0 0.0
      %792 = vmatpush1.msra.mxu0 %v755
      %793 = vmatprep.subr.mxu0 0.0
      %794 = vmatpush1.msra.mxu0 %v756
      %795 = vmatprep.subr.mxu0 0.0
      %796 = vmatpush1.msra.mxu0 %v757
      %797 = vmatprep.subr.mxu0 0.0
      %798 = vmatpush1.msra.mxu0 0.0
      %799 = vmatprep.subr.mxu0 0.0
      %800 = vmatpush1.msra.mxu0 0.0
      %801 = vmatprep.subr.mxu0 0.0
      %802 = vmatpush1.msra.mxu0 0.0
      %803 = vmatprep.subr.mxu0 0.0
      %804 = vmatpush1.msra.mxu0 0.0
      %805 = vmatprep.subr.mxu0 0.0
      %806 = vmatpush1.msra.mxu0 0.0
      %807 = vmatprep.subr.mxu0 0.0
      %808 = vmatpush1.msra.mxu0 0.0
      %809 = vmatprep.subr.mxu0 0.0
      %810 = vmatpush1.msra.mxu0 0.0
      %811 = vmatprep.subr.mxu0 0.0
      %812 = vmatpush1.msra.mxu0 0.0
      %813 = vmatprep.subr.mxu0 0.0
      %814 = vmatpush1.msra.mxu0 0.0
      %815 = vmatprep.subr.mxu0 0.0
      %816 = vmatpush1.msra.mxu0 0.0
      %817 = vmatprep.subr.mxu0 0.0
      %818 = vmatpush1.msra.mxu0 0.0
      %819 = vmatprep.subr.mxu0 0.0
      %820 = vmatpush1.msra.mxu0 0.0
      %821 = vmatprep.subr.mxu0 0.0
      %822 = vmatpush1.msra.mxu0 0.0
      %823 = vmatprep.subr.mxu0 0.0
      %824 = vmatpush1.msra.mxu0 0.0
      %825 = vmatprep.subr.mxu0 0.0
      %826 = vmatpush1.msra.mxu0 0.0
      %827 = vmatprep.subr.mxu0 0.0
      %828 = vmatpush1.msra.mxu0 0.0
      %829 = vmatprep.mubr.f32.mxu0 0.0
      %830 = vmatmul.mubr.f32.gmra.mrb[0].mxu0 %v726
      %v831 = vpop.f32.mrb[0].mxu0
      %v832 = vadd.f32 %v763, %v831
      %v833 = vpop.f32.mrb[0].mxu0
      %834 = vmatprep.mubr.f32.mxu0 0.0
      %835 = vmatmul.mubr.f32.gmra.mrb[0].mxu0 %v727
      %v836 = vpop.f32.mrb[0].mxu0
      %v837 = vadd.f32 %v763, %v836
      %v838 = vpop.f32.mrb[0].mxu0
      %839 = vmatprep.mubr.f32.mxu0 0.0
      %840 = vmatmul.mubr.f32.gmra.mrb[0].mxu0 %v728
      %v841 = vpop.f32.mrb[0].mxu0
      %v842 = vadd.f32 %v763, %v841
      %v843 = vpop.f32.mrb[0].mxu0
      %844 = vmatprep.mubr.f32.mxu0 0.0
      %845 = vmatmul.mubr.f32.gmra.mrb[0].mxu0 %v729
      %v846 = vpop.f32.mrb[0].mxu0
      %v847 = vadd.f32 %v763, %v846
      %v848 = vpop.f32.mrb[0].mxu0
      %849 = vmatprep.mubr.f32.mxu0 0.0
      %850 = vmatmul.mubr.f32.gmra.mrb[0].mxu0 %v730
      %v851 = vpop.f32.mrb[0].mxu0
      %v852 = vadd.f32 %v763, %v851
      %v853 = vpop.f32.mrb[0].mxu0
      %854 = vmatprep.mubr.f32.mxu0 0.0
      %855 = vmatmul.mubr.f32.gmra.mrb[0].mxu0 %v731
      %v856 = vpop.f32.mrb[0].mxu0
      %v857 = vadd.f32 %v763, %v856
      %v858 = vpop.f32.mrb[0].mxu0
      %859 = vmatprep.mubr.f32.mxu0 0.0
      %860 = vmatmul.mubr.f32.gmra.mrb[0].mxu0 %v732
      %v861 = vpop.f32.mrb[0].mxu0
      %v862 = vadd.f32 %v763, %v861
      %v863 = vpop.f32.mrb[0].mxu0
      %864 = vmatprep.mubr.f32.mxu0 0.0
      %865 = vmatmul.mubr.f32.gmra.mrb[0].mxu0 %v733
      %v866 = vpop.f32.mrb[0].mxu0
      %v867 = vadd.f32 %v763, %v866
      %v868 = vpop.f32.mrb[0].mxu0
      %869 = vmatprep.mubr.f32.mxu0 0.0
      %870 = vmatmul.mubr.f32.gmra.mrb[0].mxu0 %v734
      %v871 = vpop.f32.mrb[0].mxu0
      %v872 = vadd.f32 %v763, %v871
      %v873 = vpop.f32.mrb[0].mxu0
      %874 = vmatprep.mubr.f32.mxu0 0.0
      %875 = vmatmul.mubr.f32.gmra.mrb[0].mxu0 %v735
      %v876 = vpop.f32.mrb[0].mxu0
      %v877 = vadd.f32 %v763, %v876
      %v878 = vpop.f32.mrb[0].mxu0
      %879 = vmatprep.mubr.f32.mxu0 0.0
      %880 = vmatmul.mubr.f32.gmra.mrb[0].mxu0 %v736
      %v881 = vpop.f32.mrb[0].mxu0
      %v882 = vadd.f32 %v763, %v881
      %v883 = vpop.f32.mrb[0].mxu0
      %884 = vmatprep.mubr.f32.mxu0 0.0
      %885 = vmatmul.mubr.f32.gmra.mrb[0].mxu0 %v737
      %v886 = vpop.f32.mrb[0].mxu0
      %v887 = vadd.f32 %v763, %v886
      %v888 = vpop.f32.mrb[0].mxu0
      %889 = vmatprep.mubr.f32.mxu0 0.0
      %890 = vmatmul.mubr.f32.gmra.mrb[0].mxu0 %v738
      %v891 = vpop.f32.mrb[0].mxu0
      %v892 = vadd.f32 %v763, %v891
      %v893 = vpop.f32.mrb[0].mxu0
      %894 = vmatprep.mubr.f32.mxu0 0.0
      %895 = vmatmul.mubr.f32.gmra.mrb[0].mxu0 %v739
      %v896 = vpop.f32.mrb[0].mxu0
      %v897 = vadd.f32 %v763, %v896
      %v898 = vpop.f32.mrb[0].mxu0
      %899 = vmatprep.mubr.f32.mxu0 0.0
      %900 = vmatmul.mubr.f32.gmra.mrb[0].mxu0 %v740
      %v901 = vpop.f32.mrb[0].mxu0
      %v902 = vadd.f32 %v763, %v901
      %v903 = vpop.f32.mrb[0].mxu0
      %904 = vmatprep.mubr.f32.mxu0 0.0
      %905 = vmatmul.mubr.f32.gmra.mrb[0].mxu0 %v741
      %v906 = vpop.f32.mrb[0].mxu0
      %v907 = vadd.f32 %v763, %v906
      %v908 = vpop.f32.mrb[0].mxu0
      %909 = vdwg.mxu0
      %v910 = vmax.f32 %v832, 0.0
      %v911 = vmax.f32 %v837, 0.0
      %v912 = vmax.f32 %v842, 0.0
      %v913 = vmax.f32 %v847, 0.0
      %v914 = vmax.f32 %v852, 0.0
      %v915 = vmax.f32 %v857, 0.0
      %v916 = vmax.f32 %v862, 0.0
      %v917 = vmax.f32 %v867, 0.0
      %v918 = vmax.f32 %v872, 0.0
      %v919 = vmax.f32 %v877, 0.0
      %v920 = vmax.f32 %v882, 0.0
      %v921 = vmax.f32 %v887, 0.0
      %v922 = vmax.f32 %v892, 0.0
      %v923 = vmax.f32 %v897, 0.0
      %v924 = vmax.f32 %v902, 0.0
      %v925 = vmax.f32 %v907, 0.0
      %v926 = vlaneseq
      %v927 = vand.u32 %v926, 127
      %vm928 = vcmp.lt.s32.totalorder %v927, 4
      %v929 = vsel %vm928, %v910, -1e+30
      %v930 = vsel %vm928, %v911, -1e+30
      %v931 = vsel %vm928, %v912, -1e+30
      %v932 = vsel %vm928, %v913, -1e+30
      %v933 = vsel %vm928, %v914, -1e+30
      %v934 = vsel %vm928, %v915, -1e+30
      %v935 = vsel %vm928, %v916, -1e+30
      %v936 = vsel %vm928, %v917, -1e+30
      %v937 = vsel %vm928, %v918, -1e+30
      %v938 = vsel %vm928, %v919, -1e+30
      %v939 = vsel %vm928, %v920, -1e+30
      %v940 = vsel %vm928, %v921, -1e+30
      %v941 = vsel %vm928, %v922, -1e+30
      %v942 = vsel %vm928, %v923, -1e+30
      %v943 = vsel %vm928, %v924, -1e+30
      %v944 = vsel %vm928, %v925, -1e+30
      %945 = vmax.xlane.f32.xlu0 %v929
      %v946 = vpop.xlane.xlu0 %945
      %947 = vmax.xlane.f32.xlu0 %v930
      %v948 = vpop.xlane.xlu0 %947
      %949 = vmax.xlane.f32.xlu0 %v931
      %v950 = vpop.xlane.xlu0 %949
      %951 = vmax.xlane.f32.xlu0 %v932
      %v952 = vpop.xlane.xlu0 %951
      %953 = vmax.xlane.f32.xlu0 %v933
      %v954 = vpop.xlane.xlu0 %953
      %955 = vmax.xlane.f32.xlu0 %v934
      %v956 = vpop.xlane.xlu0 %955
      %957 = vmax.xlane.f32.xlu0 %v935
      %v958 = vpop.xlane.xlu0 %957
      %959 = vmax.xlane.f32.xlu0 %v936
      %v960 = vpop.xlane.xlu0 %959
      %961 = vmax.xlane.f32.xlu0 %v937
      %v962 = vpop.xlane.xlu0 %961
      %963 = vmax.xlane.f32.xlu0 %v938
      %v964 = vpop.xlane.xlu0 %963
      %965 = vmax.xlane.f32.xlu0 %v939
      %v966 = vpop.xlane.xlu0 %965
      %967 = vmax.xlane.f32.xlu0 %v940
      %v968 = vpop.xlane.xlu0 %967
      %969 = vmax.xlane.f32.xlu0 %v941
      %v970 = vpop.xlane.xlu0 %969
      %971 = vmax.xlane.f32.xlu0 %v942
      %v972 = vpop.xlane.xlu0 %971
      %973 = vmax.xlane.f32.xlu0 %v943
      %v974 = vpop.xlane.xlu0 %973
      %975 = vmax.xlane.f32.xlu0 %v944
      %v976 = vpop.xlane.xlu0 %975
      %v977 = vsub.f32 %v929, %v946
      %v978 = vsub.f32 %v930, %v948
      %v979 = vsub.f32 %v931, %v950
      %v980 = vsub.f32 %v932, %v952
      %v981 = vsub.f32 %v933, %v954
      %v982 = vsub.f32 %v934, %v956
      %v983 = vsub.f32 %v935, %v958
      %v984 = vsub.f32 %v936, %v960
      %v985 = vsub.f32 %v937, %v962
      %v986 = vsub.f32 %v938, %v964
      %v987 = vsub.f32 %v939, %v966
      %v988 = vsub.f32 %v940, %v968
      %v989 = vsub.f32 %v941, %v970
      %v990 = vsub.f32 %v942, %v972
      %v991 = vsub.f32 %v943, %v974
      %v992 = vsub.f32 %v944, %v976
      %v993 = vmul.f32 %v977, 1.442695
      %v994 = vpow.pop %v993
      %v995 = vmul.f32 %v978, 1.442695
      %v996 = vpow.pop %v995
      %v997 = vmul.f32 %v979, 1.442695
      %v998 = vpow.pop %v997
      %v999 = vmul.f32 %v980, 1.442695
      %v1000 = vpow.pop %v999
      %v1001 = vmul.f32 %v981, 1.442695
      %v1002 = vpow.pop %v1001
      %v1003 = vmul.f32 %v982, 1.442695
      %v1004 = vpow.pop %v1003
      %v1005 = vmul.f32 %v983, 1.442695
      %v1006 = vpow.pop %v1005
      %v1007 = vmul.f32 %v984, 1.442695
      %v1008 = vpow.pop %v1007
      %v1009 = vmul.f32 %v985, 1.442695
      %v1010 = vpow.pop %v1009
      %v1011 = vmul.f32 %v986, 1.442695
      %v1012 = vpow.pop %v1011
      %v1013 = vmul.f32 %v987, 1.442695
      %v1014 = vpow.pop %v1013
      %v1015 = vmul.f32 %v988, 1.442695
      %v1016 = vpow.pop %v1015
      %v1017 = vmul.f32 %v989, 1.442695
      %v1018 = vpow.pop %v1017
      %v1019 = vmul.f32 %v990, 1.442695
      %v1020 = vpow.pop %v1019
      %v1021 = vmul.f32 %v991, 1.442695
      %v1022 = vpow.pop %v1021
      %v1023 = vmul.f32 %v992, 1.442695
      %v1024 = vpow.pop %v1023
      %1025 = vadd.xlane.f32.xlu0 %v994
      %v1026 = vpop.xlane.xlu0 %1025
      %1027 = vadd.xlane.f32.xlu0 %v996
      %v1028 = vpop.xlane.xlu0 %1027
      %1029 = vadd.xlane.f32.xlu0 %v998
      %v1030 = vpop.xlane.xlu0 %1029
      %1031 = vadd.xlane.f32.xlu0 %v1000
      %v1032 = vpop.xlane.xlu0 %1031
      %1033 = vadd.xlane.f32.xlu0 %v1002
      %v1034 = vpop.xlane.xlu0 %1033
      %1035 = vadd.xlane.f32.xlu0 %v1004
      %v1036 = vpop.xlane.xlu0 %1035
      %1037 = vadd.xlane.f32.xlu0 %v1006
      %v1038 = vpop.xlane.xlu0 %1037
      %1039 = vadd.xlane.f32.xlu0 %v1008
      %v1040 = vpop.xlane.xlu0 %1039
      %1041 = vadd.xlane.f32.xlu0 %v1010
      %v1042 = vpop.xlane.xlu0 %1041
      %1043 = vadd.xlane.f32.xlu0 %v1012
      %v1044 = vpop.xlane.xlu0 %1043
      %1045 = vadd.xlane.f32.xlu0 %v1014
      %v1046 = vpop.xlane.xlu0 %1045
      %1047 = vadd.xlane.f32.xlu0 %v1016
      %v1048 = vpop.xlane.xlu0 %1047
      %1049 = vadd.xlane.f32.xlu0 %v1018
      %v1050 = vpop.xlane.xlu0 %1049
      %1051 = vadd.xlane.f32.xlu0 %v1020
      %v1052 = vpop.xlane.xlu0 %1051
      %1053 = vadd.xlane.f32.xlu0 %v1022
      %v1054 = vpop.xlane.xlu0 %1053
      %1055 = vadd.xlane.f32.xlu0 %v1024
      %v1056 = vpop.xlane.xlu0 %1055
      %v1057 = vlog2.pop %v1026
      %v1058 = vmul.f32 %v1057, 0.6931472
      %v1059 = vlog2.pop %v1028
      %v1060 = vmul.f32 %v1059, 0.6931472
      %v1061 = vlog2.pop %v1030
      %v1062 = vmul.f32 %v1061, 0.6931472
      %v1063 = vlog2.pop %v1032
      %v1064 = vmul.f32 %v1063, 0.6931472
      %v1065 = vlog2.pop %v1034
      %v1066 = vmul.f32 %v1065, 0.6931472
      %v1067 = vlog2.pop %v1036
      %v1068 = vmul.f32 %v1067, 0.6931472
      %v1069 = vlog2.pop %v1038
      %v1070 = vmul.f32 %v1069, 0.6931472
      %v1071 = vlog2.pop %v1040
      %v1072 = vmul.f32 %v1071, 0.6931472
      %v1073 = vlog2.pop %v1042
      %v1074 = vmul.f32 %v1073, 0.6931472
      %v1075 = vlog2.pop %v1044
      %v1076 = vmul.f32 %v1075, 0.6931472
      %v1077 = vlog2.pop %v1046
      %v1078 = vmul.f32 %v1077, 0.6931472
      %v1079 = vlog2.pop %v1048
      %v1080 = vmul.f32 %v1079, 0.6931472
      %v1081 = vlog2.pop %v1050
      %v1082 = vmul.f32 %v1081, 0.6931472
      %v1083 = vlog2.pop %v1052
      %v1084 = vmul.f32 %v1083, 0.6931472
      %v1085 = vlog2.pop %v1054
      %v1086 = vmul.f32 %v1085, 0.6931472
      %v1087 = vlog2.pop %v1056
      %v1088 = vmul.f32 %v1087, 0.6931472
      %v1089 = vsub.f32 %v977, %v1058
      %v1090 = vsub.f32 %v978, %v1060
      %v1091 = vsub.f32 %v979, %v1062
      %v1092 = vsub.f32 %v980, %v1064
      %v1093 = vsub.f32 %v981, %v1066
      %v1094 = vsub.f32 %v982, %v1068
      %v1095 = vsub.f32 %v983, %v1070
      %v1096 = vsub.f32 %v984, %v1072
      %v1097 = vsub.f32 %v985, %v1074
      %v1098 = vsub.f32 %v986, %v1076
      %v1099 = vsub.f32 %v987, %v1078
      %v1100 = vsub.f32 %v988, %v1080
      %v1101 = vsub.f32 %v989, %v1082
      %v1102 = vsub.f32 %v990, %v1084
      %v1103 = vsub.f32 %v991, %v1086
      %v1104 = vsub.f32 %v992, %v1088
      %1105 = vst [vmem:[#allocation11] sm:$0xff] %v1089
      %1106 = vst [vmem:[#allocation11 + $0x8] sm:$0xff] %v1090
      %1107 = vst [vmem:[#allocation11 + $0x10] sm:$0xff] %v1091
      %1108 = vst [vmem:[#allocation11 + $0x18] sm:$0xff] %v1092
      %1109 = vst [vmem:[#allocation11 + $0x20] sm:$0xff] %v1093
      %1110 = vst [vmem:[#allocation11 + $0x28] sm:$0xff] %v1094
      %1111 = vst [vmem:[#allocation11 + $0x30] sm:$0xff] %v1095
      %1112 = vst [vmem:[#allocation11 + $0x38] sm:$0xff] %v1096
      %1113 = vst [vmem:[#allocation11 + $0x40] sm:$0xff] %v1097
      %1114 = vst [vmem:[#allocation11 + $0x48] sm:$0xff] %v1098
      %1115 = vst [vmem:[#allocation11 + $0x50] sm:$0xff] %v1099
      %1116 = vst [vmem:[#allocation11 + $0x58] sm:$0xff] %v1100
      %1117 = vst [vmem:[#allocation11 + $0x60] sm:$0xff] %v1101
      %1118 = vst [vmem:[#allocation11 + $0x68] sm:$0xff] %v1102
      %1119 = vst [vmem:[#allocation11 + $0x70] sm:$0xff] %v1103
      %1120 = vst [vmem:[#allocation11 + $0x78] sm:$0xff] %v1104
    $region57: #{tpu_custom_call.1} parent=1 // pred_fallthru
      _
    // Predicated region
    $region58: #{tpu_custom_call.1} parent=1 // pred_check
      _
    $region59: #{tpu_custom_call.1} parent=1 // pred_check_branch
      %1122 = sbr.rel (0) target = $region61
    $region60: #{tpu_custom_call.1} parent=1 // pred_region
      %s1124 = ssub.s32 2048, 2048
      %1125 = vsyncadd [#allocation5], %s1124
      %s1126 = sshll.u32 [#allocation11], 4
      %s1127 = int_to_ptr.vmem [resolvable:$true] %s1126
      %1132 = dma.vmem_to_hbm [thread:$0]  %s1127, 2048, %s8, [#allocation5], 128, 128, 8
    $region61: #{tpu_custom_call.1} parent=1 // pred_fallthru
      _
    // Predicated region
    $region62: #{tpu_custom_call.1} parent=1 // pred_check
      _
    $region63: #{tpu_custom_call.1} parent=1 // pred_check_branch
      %1134 = sbr.rel (0) target = $region65
    $region64: #{tpu_custom_call.1} parent=1 // pred_region
      %1135 = dma.done [#allocation5], 2048
    $region65: #{tpu_custom_call.1} parent=1 // pred_fallthru
      _
    %1136 = vsyncpa [#allocation4], 1
    %1137 = vsyncpa [#allocation7], 1
    %1138 = vsyncpa [#allocation10], 1
    %1139 = vsyncpa [#allocation5], 1

</llo_original>
